<compile_context>
chip_gen: v7x
topology: tpu7x:2x2x1
jax: 0.10.0
libtpu: 0.0.40
codegen_flags: <defaults>
</compile_context>

<pallas_src>
import jax
import jax.numpy as jnp
from jax.experimental import pallas as pl
from jax.experimental.pallas import tpu as pltpu


def _round_up(x, m):
    return (x + m - 1) // m * m


def ietoken_logits_kernel(last_ref, h3_ref, wa_ref, wb_ref, b_ref, out_ref):
    # logits^T = Wa @ last^T + Wb @ h3^T + b     (lane-dense output: tokens on lanes)
    dn = (((1,), (1,)), ((), ()))  # contract the feature dim of both operands
    lt = jax.lax.dot_general(wa_ref[...], last_ref[...], dn,
                             preferred_element_type=jnp.float32)
    lt = lt + jax.lax.dot_general(wb_ref[...], h3_ref[...], dn,
                                  preferred_element_type=jnp.float32)
    out_ref[...] = lt + b_ref[...]                                   # (C, TM)


@jax.jit
def ietoken_forward(last_hidden, hidden3, weight, bias, labels):
    B, L, D = last_hidden.shape
    C = weight.shape[0]
    N = B * L

    # Split concat(last, h3) @ W.T into two half-weight matmuls (mathematically exact).
    wa = weight[:, :D]                      # (C, D)
    wb = weight[:, D:]                      # (C, D)
    bias2 = bias.reshape(C, 1)

    last2d = last_hidden.reshape(N, D)
    h32d = hidden3.reshape(N, D)

    # Row tile over the flattened token axis: one big block at small sizes,
    # 512-row (8- and 128-aligned) tiles otherwise; pad so the grid divides evenly.
    TM = _round_up(N, 8) if N <= 512 else 512
    Npad = _round_up(N, TM)
    if Npad != N:
        pad = Npad - N
        last2d = jnp.pad(last2d, ((0, pad), (0, 0)))
        h32d = jnp.pad(h32d, ((0, pad), (0, 0)))

    logits_t = pl.pallas_call(
        ietoken_logits_kernel,
        out_shape=jax.ShapeDtypeStruct((C, Npad), jnp.float32),
        grid_spec=pltpu.PrefetchScalarGridSpec(
            num_scalar_prefetch=0,
            grid=(Npad // TM,),
            in_specs=[
                pl.BlockSpec((TM, D), lambda i: (i, 0)),   # last_hidden_state rows
                pl.BlockSpec((TM, D), lambda i: (i, 0)),   # hidden_states[-3] rows
                pl.BlockSpec((C, D), lambda i: (0, 0)),    # W[:, :D]
                pl.BlockSpec((C, D), lambda i: (0, 0)),    # W[:, D:]
                pl.BlockSpec((C, 1), lambda i: (0, 0)),    # bias
            ],
            out_specs=pl.BlockSpec((C, TM), lambda i: (0, i)),  # lane-dense logits^T
        ),
        compiler_params=pltpu.CompilerParams(
            dimension_semantics=("parallel",)),
    )(last2d, h32d, wa, wb, bias2)

    logits = logits_t[:, :N].T.reshape(B, L, C)               # (B, L, C)

    # CrossEntropyLoss(reduction='mean') over positions with label >= 0.
    mask = labels >= 0
    maskf = mask.astype(jnp.float32)
    lab = jnp.maximum(labels, 0)
    row_max = jnp.max(logits, axis=-1, keepdims=True)
    lse = jnp.log(jnp.sum(jnp.exp(logits - row_max), axis=-1, keepdims=True)) + row_max
    picked = jnp.take_along_axis(logits, lab[..., None], axis=-1)
    nll = (lse - picked)[..., 0]                               # (B, L)
    # NOTE: NaN if every label is -1 — matches torch CrossEntropyLoss on an empty selection.
    loss = jnp.sum(nll * maskf) / jnp.sum(maskf)

    preds = jnp.argmax(logits, axis=-1).astype(jnp.int32)
    preds = jnp.where(labels < 0, labels, preds)               # preds[labels<0] = labels[labels<0]

    return {
        'loss': loss,
        'prediction': preds,                   # int32 (jax x64 disabled; torch returns int64)
        'label': labels.astype(jnp.int32),
    }


if __name__ == "__main__":
    key = jax.random.PRNGKey(0)
    B, L, D, C, V = 2, 16, 32, 4, 100      # batch, seq, d_model, nclass, vocab
    k1, k2, k3, k4 = jax.random.split(key, 4)

    # batch contents (synthetic, deterministic)
    token_ids = jax.random.randint(k1, (B, L), 0, V)
    attention_mask = jnp.ones((B, L), jnp.float32)
    # synthetic encoder outputs standing in for the pretrained LM
    last_hidden = jax.random.normal(k2, (B, L, D), jnp.float32) * attention_mask[..., None]
    hidden3 = jax.random.normal(k3, (B, L, D), jnp.float32) * attention_mask[..., None]

    labels = jnp.array(
        [[1, 0, 2, -1, 3, 0, -1, 1, 2, 2, -1, 0, 1, 3, 0, -1],
         [0, 2, 1, 1, -1, 0, 3, -1, 2, -1, 1, 0, 3, 2, 0, 1]], dtype=jnp.int32)

    # nn.Linear(2 * d_model, nclass) parameters, deterministic init
    weight = jax.random.normal(k4, (C, 2 * D), jnp.float32) * (1.0 / jnp.sqrt(2.0 * D))
    bias = jnp.zeros((C,), jnp.float32)

    out = ietoken_forward(last_hidden, hidden3, weight, bias, labels)
    jax.block_until_ready(out)
    print("KERNEL_OK")
</pallas_src>

<mosaic_0001>
module attributes {stable_mosaic.version = 11 : i64} {
  func.func @ietoken_logits_kernel(%arg0: i32, %arg1: memref<32x32xf32, #tpu.memory_space<vmem>>, %arg2: memref<32x32xf32, #tpu.memory_space<vmem>>, %arg3: memref<4x32xf32, #tpu.memory_space<vmem>>, %arg4: memref<4x32xf32, #tpu.memory_space<vmem>>, %arg5: memref<4x1xf32, #tpu.memory_space<vmem>>, %arg6: memref<4x32xf32, #tpu.memory_space<vmem>>) attributes {dimension_semantics = [#tpu.dimension_semantics<parallel>], iteration_bounds = array<i64: 1>, scalar_prefetch = 0 : i64, scratch_operands = 0 : i64, tpu.core_type = #tpu.core_type<tc>, window_params = [{transform_indices = @transform_0, window_bounds = array<i64: 32, 32>}, {transform_indices = @transform_1, window_bounds = array<i64: 32, 32>}, {pipeline_mode = #tpu.pipeline_mode<synchronous>, transform_indices = @transform_2, window_bounds = array<i64: 4, 32>}, {pipeline_mode = #tpu.pipeline_mode<synchronous>, transform_indices = @transform_3, window_bounds = array<i64: 4, 32>}, {pipeline_mode = #tpu.pipeline_mode<synchronous>, transform_indices = @transform_4, window_bounds = array<i64: 4, 1>}, {transform_indices = @transform_5, window_bounds = array<i64: 4, 32>}]} {
    %c0 = arith.constant 0 : index
    %c0_0 = arith.constant 0 : index
    %0 = vector.load %arg3[%c0, %c0_0] : memref<4x32xf32, #tpu.memory_space<vmem>>, vector<4x32xf32>
    %c0_1 = arith.constant 0 : index
    %c0_2 = arith.constant 0 : index
    %1 = vector.load %arg1[%c0_1, %c0_2] : memref<32x32xf32, #tpu.memory_space<vmem>>, vector<32x32xf32>
    %cst = arith.constant dense<0.000000e+00> : vector<4x32xf32>
    %2 = tpu.matmul %0, %1, %cst {dimension_numbers = #tpu.dot_dimension_numbers<[1], [1], [0], [0], [0, 0, 1, 0], [], []>} : vector<4x32xf32>, vector<32x32xf32>, vector<4x32xf32> -> vector<4x32xf32>
    %c0_3 = arith.constant 0 : index
    %c0_4 = arith.constant 0 : index
    %3 = vector.load %arg4[%c0_3, %c0_4] : memref<4x32xf32, #tpu.memory_space<vmem>>, vector<4x32xf32>
    %c0_5 = arith.constant 0 : index
    %c0_6 = arith.constant 0 : index
    %4 = vector.load %arg2[%c0_5, %c0_6] : memref<32x32xf32, #tpu.memory_space<vmem>>, vector<32x32xf32>
    %cst_7 = arith.constant dense<0.000000e+00> : vector<4x32xf32>
    %5 = tpu.matmul %3, %4, %cst_7 {dimension_numbers = #tpu.dot_dimension_numbers<[1], [1], [0], [0], [0, 0, 1, 0], [], []>} : vector<4x32xf32>, vector<32x32xf32>, vector<4x32xf32> -> vector<4x32xf32>
    %6 = arith.addf %2, %5 : vector<4x32xf32>
    %c0_8 = arith.constant 0 : index
    %c0_9 = arith.constant 0 : index
    %7 = vector.load %arg5[%c0_8, %c0_9] : memref<4x1xf32, #tpu.memory_space<vmem>>, vector<4x1xf32>
    %8 = vector.broadcast %7 : vector<4x1xf32> to vector<4x32xf32>
    %9 = arith.addf %6, %8 : vector<4x32xf32>
    %c0_10 = arith.constant 0 : index
    %c0_11 = arith.constant 0 : index
    %10 = vector.load %arg6[%c0_10, %c0_11] : memref<4x32xf32, #tpu.memory_space<vmem>>, vector<4x32xf32>
    tpu.vector_store %arg6[%c0_10, %c0_11], %9 {strides = array<i32>} : memref<4x32xf32, #tpu.memory_space<vmem>>, vector<4x32xf32>,
    return
  }
  func.func @transform_0(%arg0: i32) -> (i32, i32) {
    %c0_i32 = arith.constant 0 : i32
    %c0_i32_0 = arith.constant 0 : i32
    return %arg0, %c0_i32 : i32, i32
  }
  func.func @transform_1(%arg0: i32) -> (i32, i32) {
    %c0_i32 = arith.constant 0 : i32
    %c0_i32_0 = arith.constant 0 : i32
    return %arg0, %c0_i32 : i32, i32
  }
  func.func @transform_2(%arg0: i32) -> (i32, i32) {
    %c0_i32 = arith.constant 0 : i32
    %c0_i32_0 = arith.constant 0 : i32
    %c0_i32_1 = arith.constant 0 : i32
    return %c0_i32, %c0_i32_0 : i32, i32
  }
  func.func @transform_3(%arg0: i32) -> (i32, i32) {
    %c0_i32 = arith.constant 0 : i32
    %c0_i32_0 = arith.constant 0 : i32
    %c0_i32_1 = arith.constant 0 : i32
    return %c0_i32, %c0_i32_0 : i32, i32
  }
  func.func @transform_4(%arg0: i32) -> (i32, i32) {
    %c0_i32 = arith.constant 0 : i32
    %c0_i32_0 = arith.constant 0 : i32
    %c0_i32_1 = arith.constant 0 : i32
    return %c0_i32, %c0_i32_0 : i32, i32
  }
  func.func @transform_5(%arg0: i32) -> (i32, i32) {
    %c0_i32 = arith.constant 0 : i32
    %c0_i32_0 = arith.constant 0 : i32
    return %c0_i32, %arg0 : i32, i32
  }
}

</mosaic_0001>

<llo_original>
// kernel: ietoken_forward.1
$region0: #{ietoken_forward.1}
  #allocation0 [shape = 'u32[]', space=smem, size = 0x4, offset = 0x4, fixed_abs, tag = 'smem constant byte address 0x4 - core index']
  #allocation1 [shape = 'u32[144,128]{1,0:T(1,128)}', space=vmem, size = 0x12000, scoped, tag = 'internal scratch']
  %s0 = inlined_call_operand.vmem [shape: f32[32,32], index: 0, kind: input, shape index: {}]
  %s1 = inlined_call_operand.hbm [shape: f32[32,32], index: 1, kind: input, shape index: {}]
  %s2 = inlined_call_operand.vmem [shape: f32[4,32], index: 2, kind: input, shape index: {}]
  %s3 = inlined_call_operand.vmem [shape: f32[4,32], index: 3, kind: input, shape index: {}]
  %s4 = inlined_call_operand.vmem [shape: f32[4,1], index: 4, kind: input, shape index: {}]
  %s5 = inlined_call_operand.vmem [shape: f32[4,32], index: 5, kind: output, shape index: {}]
  %s6 = sld [smem:[#allocation0]]
  $region34: #{ietoken_forward.1} parent=0
    _
  %s8 = ssub.s32 1, %s6
  %s9 = scalar_select 0, %s8, %s6
  $region1: #{ietoken_forward.1} parent=0
    #allocation2 [shape = 'u8[16384]{0}', space=vmem, size = 0x4000, scoped, tag = 'input window, operand 1, single buffered']
    #allocation3 [shape = 's32[1]{0}', space=sflag, size = 0x4, scoped, tag = 'scoped memory for ietoken_forward.1']
    %10 = vsyncpa [#allocation3], 0
    // Predicated region
    $region2: #{ietoken_forward.1} parent=1 // pred_check
      _
    $region3: #{ietoken_forward.1} parent=1 // pred_check_branch
      %12 = sbr.rel (0) target = $region5
    $region4: #{ietoken_forward.1} parent=1 // pred_region
      _
    $region5: #{ietoken_forward.1} parent=1 // pred_fallthru
      _
    // Predicated region
    $region6: #{ietoken_forward.1} parent=1 // pred_check
      _
    $region7: #{ietoken_forward.1} parent=1 // pred_check_branch
      %14 = sbr.rel (0) target = $region9
    $region8: #{ietoken_forward.1} parent=1 // pred_region
      %s16 = ssub.s32 512, 512
      %17 = vsyncadd [#allocation3], %s16
      %s18 = sshll.u32 [#allocation2], 4
      %s19 = int_to_ptr.vmem [resolvable:$true] %s18
      %24 = dma.hbm_to_vmem [thread:$0]  %s1, 512, %s19, [#allocation3], 128, 128, 8
    $region9: #{ietoken_forward.1} parent=1 // pred_fallthru
      _
    // Predicated region
    $region10: #{ietoken_forward.1} parent=1 // pred_check
      _
    $region11: #{ietoken_forward.1} parent=1 // pred_check_branch
      %26 = sbr.rel (0) target = $region13
    $region12: #{ietoken_forward.1} parent=1 // pred_region
      _
    $region13: #{ietoken_forward.1} parent=1 // pred_fallthru
      _
    // Predicated region
    $region14: #{ietoken_forward.1} parent=1 // pred_check
      _
    $region15: #{ietoken_forward.1} parent=1 // pred_check_branch
      %28 = sbr.rel (0) target = $region17
    $region16: #{ietoken_forward.1} parent=1 // pred_region
      _
    $region17: #{ietoken_forward.1} parent=1 // pred_fallthru
      _
    // Predicated region
    $region18: #{ietoken_forward.1} parent=1 // pred_check
      _
    $region19: #{ietoken_forward.1} parent=1 // pred_check_branch
      %30 = sbr.rel (0) target = $region21
    $region20: #{ietoken_forward.1} parent=1 // pred_region
      _
    $region21: #{ietoken_forward.1} parent=1 // pred_fallthru
      _
    // Predicated region
    $region22: #{ietoken_forward.1} parent=1 // pred_check
      _
    $region23: #{ietoken_forward.1} parent=1 // pred_check_branch
      %32 = sbr.rel (0) target = $region25
    $region24: #{ietoken_forward.1} parent=1 // pred_region
      %33 = dma.done [#allocation3], 512
    $region25: #{ietoken_forward.1} parent=1 // pred_fallthru
      _
    %v34 = vld [vmem:[%s2] sm:$0xf]
    %v35 = vld [vmem:[%s0] sm:$0xff]
    %v36 = vld [vmem:[%s0 + $0x8] sm:$0xff]
    %v37 = vld [vmem:[%s0 + $0x10] sm:$0xff]
    %v38 = vld [vmem:[%s0 + $0x18] sm:$0xff]
    %v39 = vld [vmem:[%s3] sm:$0xf]
    %v40 = vld [vmem:[#allocation2] sm:$0xff]
    %v41 = vld [vmem:[#allocation2 + $0x8] sm:$0xff]
    %v42 = vld [vmem:[#allocation2 + $0x10] sm:$0xff]
    %v43 = vld [vmem:[#allocation2 + $0x18] sm:$0xff]
    %vm44 = vcmask 261120
    %v46 = vsel %vm44, %v39, 0
    %v49 = vsel %vm44, %v40, 0
    %v52 = vsel %vm44, %v41, 0
    %v55 = vsel %vm44, %v42, 0
    %v58 = vsel %vm44, %v43, 0
    %60 = vmatprep.subr.mxu0 0.0
    %61 = vmatpush1.xpose.msra.mxu0 %v49
    %62 = vmatprep.subr.mxu0 0.0
    %63 = vmatpush1.xpose.msra.mxu0 %v52
    %64 = vmatprep.subr.mxu0 0.0
    %65 = vmatpush1.xpose.msra.mxu0 %v55
    %66 = vmatprep.subr.mxu0 0.0
    %67 = vmatpush1.xpose.msra.mxu0 %v58
    %68 = vmatprep.subr.mxu0 0.0
    %69 = vmatpush1.xpose.msra.mxu0 0.0
    %70 = vmatprep.subr.mxu0 0.0
    %71 = vmatpush1.xpose.msra.mxu0 0.0
    %72 = vmatprep.subr.mxu0 0.0
    %73 = vmatpush1.xpose.msra.mxu0 0.0
    %74 = vmatprep.subr.mxu0 0.0
    %75 = vmatpush1.xpose.msra.mxu0 0.0
    %76 = vmatprep.subr.mxu0 0.0
    %77 = vmatpush1.xpose.msra.mxu0 0.0
    %78 = vmatprep.subr.mxu0 0.0
    %79 = vmatpush1.xpose.msra.mxu0 0.0
    %80 = vmatprep.subr.mxu0 0.0
    %81 = vmatpush1.xpose.msra.mxu0 0.0
    %82 = vmatprep.subr.mxu0 0.0
    %83 = vmatpush1.xpose.msra.mxu0 0.0
    %84 = vmatprep.subr.mxu0 0.0
    %85 = vmatpush1.xpose.msra.mxu0 0.0
    %86 = vmatprep.subr.mxu0 0.0
    %87 = vmatpush1.xpose.msra.mxu0 0.0
    %88 = vmatprep.subr.mxu0 0.0
    %89 = vmatpush1.xpose.msra.mxu0 0.0
    %90 = vmatprep.subr.mxu0 0.0
    %91 = vmatpush1.xpose.msra.mxu0 0.0
    %92 = vmatprep.subr.mxu0 0.0
    %93 = vmatpush1.xpose.msra.mxu0 0.0
    %94 = vmatprep.subr.mxu0 0.0
    %95 = vmatpush1.xpose.msra.mxu0 0.0
    %96 = vmatprep.subr.mxu0 0.0
    %97 = vmatpush1.xpose.msra.mxu0 0.0
    %98 = vmatprep.subr.mxu0 0.0
    %99 = vmatpush1.xpose.msra.mxu0 0.0
    %100 = vmatprep.subr.mxu0 0.0
    %101 = vmatpush1.xpose.msra.mxu0 0.0
    %102 = vmatprep.subr.mxu0 0.0
    %103 = vmatpush1.xpose.msra.mxu0 0.0
    %104 = vmatprep.subr.mxu0 0.0
    %105 = vmatpush1.xpose.msra.mxu0 0.0
    %106 = vmatprep.subr.mxu0 0.0
    %107 = vmatpush1.xpose.msra.mxu0 0.0
    %108 = vmatprep.subr.mxu0 0.0
    %109 = vmatpush1.xpose.msra.mxu0 0.0
    %110 = vmatprep.subr.mxu0 0.0
    %111 = vmatpush1.xpose.msra.mxu0 0.0
    %112 = vmatprep.subr.mxu0 0.0
    %113 = vmatpush1.xpose.msra.mxu0 0.0
    %114 = vmatprep.subr.mxu0 0.0
    %115 = vmatpush1.xpose.msra.mxu0 0.0
    %116 = vmatprep.subr.mxu0 0.0
    %117 = vmatpush1.xpose.msra.mxu0 0.0
    %118 = vmatprep.subr.mxu0 0.0
    %119 = vmatpush1.xpose.msra.mxu0 0.0
    %120 = vmatprep.subr.mxu0 0.0
    %121 = vmatpush1.xpose.msra.mxu0 0.0
    %122 = vmatprep.subr.mxu0 0.0
    %123 = vmatpush1.xpose.msra.mxu0 0.0
    %124 = vmatprep.mubr.f32.mxu0 0.0
    %125 = vmatmul.mubr.f32.gmra.mrb[0].mxu0 %v46
    %v126 = vpop.f32.mrb[0].mxu0
    %v127 = vadd.f32 0.0, %v126
    %v128 = vpop.f32.mrb[0].mxu0
    %129 = vdwg.mxu0
    %v131 = vsel %vm44, %v34, 0
    %v134 = vsel %vm44, %v35, 0
    %v137 = vsel %vm44, %v36, 0
    %v140 = vsel %vm44, %v37, 0
    %v143 = vsel %vm44, %v38, 0
    %145 = vmatprep.subr.mxu0 0.0
    %146 = vmatpush1.xpose.msra.mxu0 %v134
    %147 = vmatprep.subr.mxu0 0.0
    %148 = vmatpush1.xpose.msra.mxu0 %v137
    %149 = vmatprep.subr.mxu0 0.0
    %150 = vmatpush1.xpose.msra.mxu0 %v140
    %151 = vmatprep.subr.mxu0 0.0
    %152 = vmatpush1.xpose.msra.mxu0 %v143
    %153 = vmatprep.subr.mxu0 0.0
    %154 = vmatpush1.xpose.msra.mxu0 0.0
    %155 = vmatprep.subr.mxu0 0.0
    %156 = vmatpush1.xpose.msra.mxu0 0.0
    %157 = vmatprep.subr.mxu0 0.0
    %158 = vmatpush1.xpose.msra.mxu0 0.0
    %159 = vmatprep.subr.mxu0 0.0
    %160 = vmatpush1.xpose.msra.mxu0 0.0
    %161 = vmatprep.subr.mxu0 0.0
    %162 = vmatpush1.xpose.msra.mxu0 0.0
    %163 = vmatprep.subr.mxu0 0.0
    %164 = vmatpush1.xpose.msra.mxu0 0.0
    %165 = vmatprep.subr.mxu0 0.0
    %166 = vmatpush1.xpose.msra.mxu0 0.0
    %167 = vmatprep.subr.mxu0 0.0
    %168 = vmatpush1.xpose.msra.mxu0 0.0
    %169 = vmatprep.subr.mxu0 0.0
    %170 = vmatpush1.xpose.msra.mxu0 0.0
    %171 = vmatprep.subr.mxu0 0.0
    %172 = vmatpush1.xpose.msra.mxu0 0.0
    %173 = vmatprep.subr.mxu0 0.0
    %174 = vmatpush1.xpose.msra.mxu0 0.0
    %175 = vmatprep.subr.mxu0 0.0
    %176 = vmatpush1.xpose.msra.mxu0 0.0
    %177 = vmatprep.subr.mxu0 0.0
    %178 = vmatpush1.xpose.msra.mxu0 0.0
    %179 = vmatprep.subr.mxu0 0.0
    %180 = vmatpush1.xpose.msra.mxu0 0.0
    %181 = vmatprep.subr.mxu0 0.0
    %182 = vmatpush1.xpose.msra.mxu0 0.0
    %183 = vmatprep.subr.mxu0 0.0
    %184 = vmatpush1.xpose.msra.mxu0 0.0
    %185 = vmatprep.subr.mxu0 0.0
    %186 = vmatpush1.xpose.msra.mxu0 0.0
    %187 = vmatprep.subr.mxu0 0.0
    %188 = vmatpush1.xpose.msra.mxu0 0.0
    %189 = vmatprep.subr.mxu0 0.0
    %190 = vmatpush1.xpose.msra.mxu0 0.0
    %191 = vmatprep.subr.mxu0 0.0
    %192 = vmatpush1.xpose.msra.mxu0 0.0
    %193 = vmatprep.subr.mxu0 0.0
    %194 = vmatpush1.xpose.msra.mxu0 0.0
    %195 = vmatprep.subr.mxu0 0.0
    %196 = vmatpush1.xpose.msra.mxu0 0.0
    %197 = vmatprep.subr.mxu0 0.0
    %198 = vmatpush1.xpose.msra.mxu0 0.0
    %199 = vmatprep.subr.mxu0 0.0
    %200 = vmatpush1.xpose.msra.mxu0 0.0
    %201 = vmatprep.subr.mxu0 0.0
    %202 = vmatpush1.xpose.msra.mxu0 0.0
    %203 = vmatprep.subr.mxu0 0.0
    %204 = vmatpush1.xpose.msra.mxu0 0.0
    %205 = vmatprep.subr.mxu0 0.0
    %206 = vmatpush1.xpose.msra.mxu0 0.0
    %207 = vmatprep.subr.mxu0 0.0
    %208 = vmatpush1.xpose.msra.mxu0 0.0
    %209 = vmatprep.mubr.f32.mxu0 0.0
    %210 = vmatmul.mubr.f32.gmra.mrb[0].mxu0 %v131
    %v211 = vpop.f32.mrb[0].mxu0
    %v212 = vadd.f32 %v127, %v211
    %v213 = vpop.f32.mrb[0].mxu0
    %214 = vdwg.mxu0
    %v215 = vld [vmem:[%s4] sm:$0xf]
    %217 = vset.pattern.permute.xlu0 0
    %218 = vperm.xlu0 %217, %v215
    %v219 = vpop.permute.xlu0 %218
    %v221 = vadd.f32 %v212, %v219
    %vm222 = vcmask 257024
    %223 = vst.msk [vmem:[%s5] sm:$0xf] %vm222, %v221
    // Predicated region
    $region26: #{ietoken_forward.1} parent=1 // pred_check
      _
    $region27: #{ietoken_forward.1} parent=1 // pred_check_branch
      %225 = sbr.rel (0) target = $region29
    $region28: #{ietoken_forward.1} parent=1 // pred_region
      _
    $region29: #{ietoken_forward.1} parent=1 // pred_fallthru
      _
    // Predicated region
    $region30: #{ietoken_forward.1} parent=1 // pred_check
      _
    $region31: #{ietoken_forward.1} parent=1 // pred_check_branch
      %227 = sbr.rel (0) target = $region33
    $region32: #{ietoken_forward.1} parent=1 // pred_region
      _
    $region33: #{ietoken_forward.1} parent=1 // pred_fallthru
      _
    %228 = vsyncpa [#allocation3], 1

</llo_original>
